<compile_context>
chip_gen: v6e
topology: v6e:2x2x1
jax: 0.10.0
libtpu: 0.0.40
codegen_flags: <defaults>
</compile_context>

<pallas_src>
import functools
import math
from typing import NamedTuple

import jax
import jax.numpy as jnp
from jax.experimental import pallas as pl
from jax.experimental.pallas import tpu as pltpu


# --------------------------------------------------------------------------
# helpers
# --------------------------------------------------------------------------
def _round_up(v, m):
    return ((v + m - 1) // m) * m


def _pick_tile(total, multiple, cap):
    """Largest multiple of `multiple` that divides `total` and is <= cap."""
    best = multiple
    t = multiple
    while t <= min(cap, total):
        if total % t == 0:
            best = t
        t += multiple
    return best


def _vmem_capacity_bytes():
    """Per-generation VMEM capacity (v5e/v6e: 128 MiB, v7x: 64 MiB)."""
    try:
        return int(pltpu.get_tpu_info().vmem_capacity_bytes)
    except Exception:
        return 64 * 1024 * 1024  # conservative fallback (also used off-TPU)


def _apply_activation(y, activation, approx_gelu=False):
    """Elementwise activation on an f32 tile (runs inside the kernel)."""
    if activation == "relu":
        return jnp.maximum(y, 0.0)
    elif activation == "mish":
        # PyTorch Mish: x * tanh(softplus(x)); softplus has a threshold=20.
        sp = jnp.where(y > 20.0, y, jnp.log1p(jnp.exp(jnp.minimum(y, 20.0))))
        return y * jnp.tanh(sp)
    elif activation == "gelu":
        if approx_gelu:
            # Opt-in tanh approximation: tanh hits the (otherwise idle) EUP
            # slot instead of the long erf VALU polynomial.
            c = jnp.float32(math.sqrt(2.0 / math.pi))
            return 0.5 * y * (1.0 + jnp.tanh(c * (y + 0.044715 * y * y * y)))
        # PyTorch nn.GELU() default is the exact erf formulation.
        inv_sqrt2 = jnp.float32(1.0 / math.sqrt(2.0))
        return 0.5 * y * (1.0 + jax.lax.erf(y * inv_sqrt2))
    elif activation == "leaky_relu":
        # PyTorch nn.LeakyReLU() default negative_slope = 0.01
        return jnp.where(y >= 0.0, y, 0.01 * y)
    else:
        raise ValueError(f"Unsupported activation: {activation}")


# --------------------------------------------------------------------------
# kernel
# --------------------------------------------------------------------------
def _linear_block_kernel(*refs, activation, dropout_p, multi_k, use_scratch,
                         use_dropout, approx_gelu):
    # ref order: x, w, b, [rand], o, [acc]
    refs = list(refs)
    acc_ref = refs.pop() if use_scratch else None
    o_ref = refs.pop()
    if use_dropout:
        x_ref, w_ref, b_ref, rand_ref = refs
    else:
        x_ref, w_ref, b_ref = refs
        rand_ref = None

    def epilogue(y32):
        y32 = y32 + b_ref[...]                      # bias (f32)
        y32 = _apply_activation(y32, activation, approx_gelu)
        if use_dropout:
            # Inverted dropout; mask comes from a uniform [0,1) input tile.
            keep = rand_ref[...] >= jnp.float32(dropout_p)
            y32 = jnp.where(keep,
                            y32 * jnp.float32(1.0 / (1.0 - dropout_p)), 0.0)
        o_ref[...] = y32.astype(o_ref.dtype)

    if not multi_k:
        # Single contraction step: keep the accumulator in vregs, no scratch.
        y = jnp.dot(x_ref[...].astype(w_ref.dtype), w_ref[...],
                    preferred_element_type=jnp.float32)
        epilogue(y)
        return

    # K-tiled path: f32 accumulation either in VMEM scratch or, when the
    # output dtype is already f32, directly in the (K-resident) output block.
    acc = acc_ref if acc_ref is not None else o_ref
    k = pl.program_id(2)            # NOTE: outside any pl.when body
    num_k = pl.num_programs(2)

    @pl.when(k == 0)
    def _init():
        acc[...] = jnp.zeros(acc.shape, acc.dtype)

    acc[...] += jnp.dot(x_ref[...].astype(w_ref.dtype), w_ref[...],
                        preferred_element_type=jnp.float32)

    @pl.when(k == num_k - 1)
    def _final():
        epilogue(acc[...].astype(jnp.float32))


# --------------------------------------------------------------------------
# parameter preparation (do this ONCE per layer, not per forward call)
# --------------------------------------------------------------------------
class LinearBlockParams(NamedTuple):
    wt: jax.Array          # (in_ch, dim_pad), compute dtype, = W^T (padded)
    b2: jax.Array          # (1, dim_pad), float32
    in_ch: int
    dim: int
    dim_pad: int
    bn: int
    bk: int
    weight_resident: bool


def prepare_linear_block_params(weight, bias, *, compute_dtype=jnp.bfloat16,
                                block_n=512, block_k=1024):
    """Transpose / cast / pad the nn.Linear weight once.

    weight: (dim, in_channels), bias: (dim,).  compute_dtype are the matmul
    operand dtypes (bf16 by default; accumulation is always f32)."""
    dim, in_ch = weight.shape
    itemsize = jnp.dtype(compute_dtype).itemsize
    vmem_cap = _vmem_capacity_bytes()

    dim_pad = _round_up(dim, 128)
    # Weight-resident when W^T (double-buffered by the pipeline) uses only a
    # modest slice of VMEM -> DMA'd from HBM exactly once for the whole grid.
    weight_resident = in_ch * dim_pad * itemsize <= vmem_cap // 8

    if weight_resident:
        bn = dim_pad
        bk = in_ch                                   # single K step
    else:
        # Prefer 256-aligned N tiles (v6e/v7x 256x256 MXU); pad dim a bit
        # further rather than silently falling back to 128-wide tiles.
        if dim_pad >= 256 and dim_pad % 256 != 0:
            dim_pad = _round_up(dim, 256)
        bn = _pick_tile(dim_pad, 256 if dim_pad % 256 == 0 else 128,
                        max(128, block_n))
        if in_ch % 256 == 0:
            bk = _pick_tile(in_ch, 256, max(256, block_k))
        elif in_ch % 128 == 0:
            bk = _pick_tile(in_ch, 128, max(128, block_k))
        else:
            bk = in_ch                               # single K step, no x pad

    wt = weight.T.astype(compute_dtype)              # (in_ch, dim)
    b2 = bias.astype(jnp.float32).reshape(1, dim)
    if dim_pad != dim:
        wt = jnp.pad(wt, ((0, 0), (0, dim_pad - dim)))
        b2 = jnp.pad(b2, ((0, 0), (0, dim_pad - dim)))
    return LinearBlockParams(wt=wt, b2=b2, in_ch=in_ch, dim=dim,
                             dim_pad=dim_pad, bn=bn, bk=bk,
                             weight_resident=weight_resident)


# --------------------------------------------------------------------------
# forward
# --------------------------------------------------------------------------
def linear_block_apply(params, x, *, activation, dropout_p=0.0, train=False,
                       rng=None, block_rows=512, approx_gelu=False):
    """Apply Linear -> activation -> (inverted) dropout with prepared params."""
    in_ch, dim, dim_pad = params.in_ch, params.dim, params.dim_pad
    assert x.shape[-1] == in_ch
    lead = x.shape[:-1]
    out_dtype = x.dtype

    x2 = x.reshape(-1, in_ch)            # no cast / pad: handled in-kernel
    n = x2.shape[0]

    use_dropout = bool(train) and float(dropout_p) > 0.0
    if use_dropout:
        assert 0.0 < float(dropout_p) < 1.0

    # ---- tile sizes --------------------------------------------------------
    itemsize_x = jnp.dtype(x2.dtype).itemsize
    itemsize_o = jnp.dtype(out_dtype).itemsize
    itemsize_w = jnp.dtype(params.wt.dtype).itemsize
    row_align = max(8, 32 // min(itemsize_x, itemsize_o))   # sublane packing

    bn, bk = params.bn, params.bk
    multi_k = bk < in_ch
    use_scratch = multi_k and jnp.dtype(out_dtype) != jnp.dtype(jnp.float32)

    bm = min(_round_up(block_rows, row_align), _round_up(n, row_align))
    bm = max(bm, row_align)

    # Per-generation VMEM budget (v5e/v6e 128 MiB, v7x 64 MiB).
    vmem_cap = _vmem_capacity_bytes()
    vmem_limit = int(min(vmem_cap * 0.85, 100 * 1024 * 1024))
    budget = int(vmem_limit * 0.85)

    def _footprint(bm_):
        f = 2 * bm_ * bk * itemsize_x            # x (double-buffered)
        f += 2 * bk * bn * itemsize_w            # W^T
        f += 2 * bm_ * bn * itemsize_o           # out
        f += 2 * bn * 4                          # bias
        if use_scratch:
            f += bm_ * bn * 4                    # f32 accumulator
        if use_dropout:
            f += 2 * bm_ * bn * 4                # dropout uniforms
        return f

    while _footprint(bm) > budget and bm > row_align:
        bm = max(row_align, _round_up(bm // 2, row_align))

    grid_m = pl.cdiv(n, bm)
    grid_n = dim_pad // bn
    # v7x has 2 TensorCores: make sure the 'parallel' axes have >= 2 programs
    # for non-tiny problems so one core isn't idle.
    if grid_m == 1 and grid_n == 1 and n >= 256:
        bm = max(row_align, _round_up(pl.cdiv(n, 2), row_align))
        grid_m = pl.cdiv(n, bm)

    # ---- optional dropout uniforms ----------------------------------------
    # TODO(synk): mask is deterministic from `rng` but cannot bit-match
    # torch.nn.Dropout's RNG stream; callers must vary `rng` per training step.
    extra_inputs = []
    if use_dropout:
        if rng is None:
            rng = jax.random.PRNGKey(0)
        rand = jax.random.uniform(rng, (n, dim_pad), dtype=jnp.float32)
        extra_inputs.append(rand)

    # ---- specs / grid -------------------------------------------------------
    if multi_k:
        grid = (grid_m, grid_n, in_ch // bk)
        x_spec = pl.BlockSpec((bm, bk), lambda i, j, k: (i, k))
        w_spec = pl.BlockSpec((bk, bn), lambda i, j, k: (k, j))
        b_spec = pl.BlockSpec((1, bn), lambda i, j, k: (0, j))
        o_spec = pl.BlockSpec((bm, bn), lambda i, j, k: (i, j))
        r_spec = pl.BlockSpec((bm, bn), lambda i, j, k: (i, j))
        dims = ("parallel", "parallel", "arbitrary")
    else:
        grid = (grid_m, grid_n)
        x_spec = pl.BlockSpec((bm, bk), lambda i, j: (i, 0))
        w_spec = pl.BlockSpec((bk, bn), lambda i, j: (0, j))
        b_spec = pl.BlockSpec((1, bn), lambda i, j: (0, j))
        o_spec = pl.BlockSpec((bm, bn), lambda i, j: (i, j))
        r_spec = pl.BlockSpec((bm, bn), lambda i, j: (i, j))
        dims = ("parallel", "parallel")

    in_specs = [x_spec, w_spec, b_spec] + ([r_spec] if use_dropout else [])
    scratch = [pltpu.VMEM((bm, bn), jnp.float32)] if use_scratch else []

    kernel = functools.partial(
        _linear_block_kernel,
        activation=activation,
        dropout_p=float(dropout_p),
        multi_k=multi_k,
        use_scratch=use_scratch,
        use_dropout=use_dropout,
        approx_gelu=approx_gelu,
    )

    n_trans = {"relu": 0, "leaky_relu": 0, "gelu": 1, "mish": 3}[activation]
    extra_bytes = sum(a.size * a.dtype.itemsize for a in extra_inputs)
    cost = pl.CostEstimate(
        flops=2 * n * in_ch * dim_pad,
        transcendentals=n_trans * n * dim_pad,
        bytes_accessed=(x2.size * itemsize_x
                        + params.wt.size * itemsize_w
                        + params.b2.size * 4
                        + n * dim_pad * itemsize_o
                        + extra_bytes),
    )

    out = pl.pallas_call(
        kernel,
        out_shape=jax.ShapeDtypeStruct((n, dim_pad), out_dtype),
        grid=grid,
        in_specs=in_specs,
        out_specs=o_spec,
        scratch_shapes=scratch,
        compiler_params=pltpu.CompilerParams(
            dimension_semantics=dims,
            vmem_limit_bytes=vmem_limit),
        cost_estimate=cost,
    )(x2, params.wt, params.b2, *extra_inputs)

    return out[:, :dim].reshape(*lead, dim)


def linear_block_forward(x, weight, bias, *, activation, dropout_p=0.0,
                         train=False, rng=None, compute_dtype=jnp.bfloat16,
                         block_rows=512, approx_gelu=False):
    """One-shot convenience wrapper (re-prepares the weight every call).

    For repeated application, call prepare_linear_block_params once and reuse
    it via linear_block_apply (avoids the per-call transpose/pad/cast pass)."""
    params = prepare_linear_block_params(weight, bias,
                                         compute_dtype=compute_dtype)
    return linear_block_apply(params, x, activation=activation,
                              dropout_p=dropout_p, train=train, rng=rng,
                              block_rows=block_rows, approx_gelu=approx_gelu)


def init_linear_params(key, in_channels, dim, dtype=jnp.float32):
    # nn.Linear default init: W, b ~ U(-1/sqrt(in_channels), 1/sqrt(in_channels))
    kw, kb = jax.random.split(key)
    bound = 1.0 / math.sqrt(in_channels)
    weight = jax.random.uniform(kw, (dim, in_channels), dtype,
                                minval=-bound, maxval=bound)
    bias = jax.random.uniform(kb, (dim,), dtype, minval=-bound, maxval=bound)
    return weight, bias


if __name__ == "__main__":
    cfg = {
        "in_channels": 32,
        "dim": 64,
        "activation": "relu",   # supported: relu | mish | gelu | leaky_relu
        "dropout": 0.1,
    }

    key = jax.random.PRNGKey(0)
    kx, kp, kd = jax.random.split(key, 3)

    # x: (batch=2, seq=8, in_channels=32); Linear acts on the last axis.
    x = jax.random.normal(kx, (2, 8, cfg["in_channels"]), dtype=jnp.float32)
    weight, bias = init_linear_params(kp, cfg["in_channels"], cfg["dim"])

    pre = x @ weight.T + bias
    ref_relu = jnp.maximum(pre, 0.0)

    # --- eval mode, f32 operands: exact check vs. plain-JAX reference -------
    params_f32 = prepare_linear_block_params(weight, bias,
                                             compute_dtype=jnp.float32)
    out = linear_block_apply(params_f32, x, activation=cfg["activation"],
                             dropout_p=cfg["dropout"], train=False)
    out = jax.block_until_ready(out)
    assert out.shape == (2, 8, cfg["dim"])
    assert jnp.allclose(out, ref_relu, atol=1e-5, rtol=1e-5)

    # --- eval mode, default bf16 operands + f32 accumulation (gelu) ---------
    params_bf16 = prepare_linear_block_params(weight, bias)   # bf16 default
    out_bf16 = jax.block_until_ready(
        linear_block_apply(params_bf16, x, activation="gelu"))
    ref_gelu = 0.5 * pre * (1.0 + jax.lax.erf(pre / jnp.sqrt(2.0)))
    assert jnp.allclose(out_bf16, ref_gelu, atol=3e-2, rtol=3e-2)

    # --- mish sanity (bf16 operands) -----------------------------------------
    out_mish = jax.block_until_ready(
        linear_block_apply(params_bf16, x, activation="mish"))
    ref_mish = pre * jnp.tanh(jnp.logaddexp(pre, 0.0))
    assert jnp.allclose(out_mish, ref_mish, atol=3e-2, rtol=3e-2)

    # --- train mode: inverted dropout -> every element is 0 or ref/(1-p) ----
    out_tr = linear_block_apply(params_f32, x, activation=cfg["activation"],
                                dropout_p=cfg["dropout"], train=True, rng=kd)
    out_tr = jax.block_until_ready(out_tr)
    scaled = ref_relu / (1.0 - cfg["dropout"])
    ok = (jnp.isclose(out_tr, 0.0, atol=1e-6)
          | jnp.isclose(out_tr, scaled, atol=1e-4, rtol=1e-4))
    assert out_tr.shape == (2, 8, cfg["dim"])
    assert bool(jnp.all(jnp.isfinite(out_tr)))
    assert bool(jnp.all(ok))

    print("KERNEL_OK")
</pallas_src>

<mosaic_0001>
module attributes {stable_mosaic.version = 11 : i64} {
  func.func @_linear_block_kernel(%arg0: i32, %arg1: i32, %arg2: memref<16x32xf32, #tpu.memory_space<vmem>>, %arg3: memref<32x128xf32, #tpu.memory_space<vmem>>, %arg4: memref<1x128xf32, #tpu.memory_space<vmem>>, %arg5: memref<16x128xf32, #tpu.memory_space<vmem>>) attributes {dimension_semantics = [#tpu.dimension_semantics<parallel>, #tpu.dimension_semantics<parallel>], iteration_bounds = array<i64: 1, 1>, scalar_prefetch = 0 : i64, scratch_operands = 0 : i64, tpu.core_type = #tpu.core_type<tc>, window_params = [{transform_indices = @transform_0, window_bounds = array<i64: 16, 32>}, {transform_indices = @transform_1, window_bounds = array<i64: 32, 128>}, {transform_indices = @transform_2, window_bounds = array<i64: 1, 128>}, {transform_indices = @transform_3, window_bounds = array<i64: 16, 128>}]} {
    %c0 = arith.constant 0 : index
    %c0_0 = arith.constant 0 : index
    %0 = vector.load %arg2[%c0, %c0_0] : memref<16x32xf32, #tpu.memory_space<vmem>>, vector<16x32xf32>
    %c0_1 = arith.constant 0 : index
    %c0_2 = arith.constant 0 : index
    %1 = vector.load %arg3[%c0_1, %c0_2] : memref<32x128xf32, #tpu.memory_space<vmem>>, vector<32x128xf32>
    %cst = arith.constant dense<0.000000e+00> : vector<16x128xf32>
    %2 = tpu.matmul %0, %1, %cst {dimension_numbers = #tpu.dot_dimension_numbers<[1], [0], [0], [1], [0, 0, 1, 1], [], []>} : vector<16x32xf32>, vector<32x128xf32>, vector<16x128xf32> -> vector<16x128xf32>
    %c0_3 = arith.constant 0 : index
    %c0_4 = arith.constant 0 : index
    %3 = vector.load %arg4[%c0_3, %c0_4] : memref<1x128xf32, #tpu.memory_space<vmem>>, vector<1x128xf32>
    %4 = vector.broadcast %3 : vector<1x128xf32> to vector<16x128xf32>
    %5 = arith.addf %2, %4 : vector<16x128xf32>
    %cst_5 = arith.constant 0.000000e+00 : f32
    %6 = vector.broadcast %cst_5 : f32 to vector<16x128xf32>
    %7 = arith.maximumf %5, %6 : vector<16x128xf32>
    %c0_6 = arith.constant 0 : index
    %c0_7 = arith.constant 0 : index
    %8 = vector.load %arg5[%c0_6, %c0_7] : memref<16x128xf32, #tpu.memory_space<vmem>>, vector<16x128xf32>
    tpu.vector_store %arg5[%c0_6, %c0_7], %7 {strides = array<i32>} : memref<16x128xf32, #tpu.memory_space<vmem>>, vector<16x128xf32>,
    return
  }
  func.func @transform_0(%arg0: i32, %arg1: i32) -> (i32, i32) {
    %c0_i32 = arith.constant 0 : i32
    %c0_i32_0 = arith.constant 0 : i32
    return %arg0, %c0_i32 : i32, i32
  }
  func.func @transform_1(%arg0: i32, %arg1: i32) -> (i32, i32) {
    %c0_i32 = arith.constant 0 : i32
    %c0_i32_0 = arith.constant 0 : i32
    return %c0_i32, %arg1 : i32, i32
  }
  func.func @transform_2(%arg0: i32, %arg1: i32) -> (i32, i32) {
    %c0_i32 = arith.constant 0 : i32
    %c0_i32_0 = arith.constant 0 : i32
    return %c0_i32, %arg1 : i32, i32
  }
  func.func @transform_3(%arg0: i32, %arg1: i32) -> (i32, i32) {
    %c0_i32 = arith.constant 0 : i32
    return %arg0, %arg1 : i32, i32
  }
}

</mosaic_0001>

<llo_original>
// kernel: tpu_custom_call.1
$region0: #{tpu_custom_call.1}
  #allocation0 [shape = 'u32[]', space=smem, size = 0x4, offset = 0x4, fixed_abs, tag = 'smem constant byte address 0x4 - core index']
  #allocation1 [shape = 'u32[144,128]{1,0:T(1,128)}', space=vmem, size = 0x12000, scoped, tag = 'internal scratch']
  %s0 = inlined_call_operand.hbm [shape: f32[16,32], index: 0, kind: input, shape index: {}]
  %s1 = inlined_call_operand.hbm [shape: f32[32,128], index: 1, kind: input, shape index: {}]
  %s2 = inlined_call_operand.vmem [shape: f32[1,128], index: 2, kind: input, shape index: {}]
  %s3 = inlined_call_operand.hbm [shape: f32[16,128], index: 3, kind: output, shape index: {}]
  %s4 = sld [smem:[#allocation0]]
  $region30: #{tpu_custom_call.1} parent=0
    _
  %s6 = ssub.s32 1, %s4
  %s7 = scalar_select 0, %s6, %s4
  $region1: #{tpu_custom_call.1} parent=0
    #allocation2 [shape = 'u8[8192]{0}', space=vmem, size = 0x2000, scoped, tag = 'input window, operand 0, single buffered']
    #allocation3 [shape = 's32[1]{0}', space=sflag, size = 0x4, scoped, tag = 'scoped memory for tpu_custom_call.1']
    #allocation4 [shape = 's32[1]{0}', space=sflag, size = 0x4, scoped, tag = 'scoped memory for tpu_custom_call.1']
    #allocation5 [shape = 'u8[16384]{0}', space=vmem, size = 0x4000, scoped, tag = 'input window, operand 1, single buffered']
    #allocation6 [shape = 's32[1]{0}', space=sflag, size = 0x4, scoped, tag = 'scoped memory for tpu_custom_call.1']
    #allocation7 [shape = 'u8[8192]{0}', space=vmem, size = 0x2000, scoped, tag = 'output window, operand 0, single buffered']
    %8 = vsyncpa [#allocation3], 0
    %9 = vsyncpa [#allocation6], 0
    %10 = vsyncpa [#allocation4], 0
    // Predicated region
    $region2: #{tpu_custom_call.1} parent=1 // pred_check
      _
    $region3: #{tpu_custom_call.1} parent=1 // pred_check_branch
      %12 = sbr.rel (0) target = $region5
    $region4: #{tpu_custom_call.1} parent=1 // pred_region
      %s14 = ssub.s32 256, 256
      %15 = vsyncadd [#allocation3], %s14
      %s16 = sshll.u32 [#allocation2], 4
      %s17 = int_to_ptr.vmem [resolvable:$true] %s16
      %22 = dma.hbm_to_vmem [thread:$0]  %s0, 256, %s17, [#allocation3], 128, 128, 8
    $region5: #{tpu_custom_call.1} parent=1 // pred_fallthru
      _
    // Predicated region
    $region6: #{tpu_custom_call.1} parent=1 // pred_check
      _
    $region7: #{tpu_custom_call.1} parent=1 // pred_check_branch
      %24 = sbr.rel (0) target = $region9
    $region8: #{tpu_custom_call.1} parent=1 // pred_region
      %s26 = ssub.s32 512, 512
      %27 = vsyncadd [#allocation6], %s26
      %s28 = sshll.u32 [#allocation5], 4
      %s29 = int_to_ptr.vmem [resolvable:$true] %s28
      %34 = dma.hbm_to_vmem [thread:$0]  %s1, 512, %s29, [#allocation6], 128, 128, 8
    $region9: #{tpu_custom_call.1} parent=1 // pred_fallthru
      _
    // Predicated region
    $region10: #{tpu_custom_call.1} parent=1 // pred_check
      _
    $region11: #{tpu_custom_call.1} parent=1 // pred_check_branch
      %36 = sbr.rel (0) target = $region13
    $region12: #{tpu_custom_call.1} parent=1 // pred_region
      _
    $region13: #{tpu_custom_call.1} parent=1 // pred_fallthru
      _
    // Predicated region
    $region14: #{tpu_custom_call.1} parent=1 // pred_check
      _
    $region15: #{tpu_custom_call.1} parent=1 // pred_check_branch
      %38 = sbr.rel (0) target = $region17
    $region16: #{tpu_custom_call.1} parent=1 // pred_region
      %39 = dma.done [#allocation3], 256
    $region17: #{tpu_custom_call.1} parent=1 // pred_fallthru
      _
    // Predicated region
    $region18: #{tpu_custom_call.1} parent=1 // pred_check
      _
    $region19: #{tpu_custom_call.1} parent=1 // pred_check_branch
      %41 = sbr.rel (0) target = $region21
    $region20: #{tpu_custom_call.1} parent=1 // pred_region
      %42 = dma.done [#allocation6], 512
    $region21: #{tpu_custom_call.1} parent=1 // pred_fallthru
      _
    %v43 = vld [vmem:[#allocation2] sm:$0xff]
    %v44 = vld [vmem:[#allocation2 + $0x8] sm:$0xff]
    %v45 = vld [vmem:[#allocation5] sm:$0xff]
    %v46 = vld [vmem:[#allocation5 + $0x8] sm:$0xff]
    %v47 = vld [vmem:[#allocation5 + $0x10] sm:$0xff]
    %v48 = vld [vmem:[#allocation5 + $0x18] sm:$0xff]
    %v49 = vld [vmem:[%s2] sm:$0x1]
    %v51 = vlaneseq
    %v52 = vshrl.u32 %v51, 7
    %v53 = vsub.s32 0, %v52
    %v54 = vrot.slane %v49, %v53
    %vm56 = vcmask 261120
    %v58 = vsel %vm56, %v43, 0
    %v61 = vsel %vm56, %v44, 0
    %63 = vmatprep.subr.mxu0 0.0
    %64 = vmatpush1.msra.mxu0 0.0
    %65 = vmatprep.subr.mxu0 0.0
    %66 = vmatpush1.msra.mxu0 0.0
    %67 = vmatprep.subr.mxu0 0.0
    %68 = vmatpush1.msra.mxu0 0.0
    %69 = vmatprep.subr.mxu0 0.0
    %70 = vmatpush1.msra.mxu0 0.0
    %71 = vmatprep.subr.mxu0 0.0
    %72 = vmatpush1.msra.mxu0 0.0
    %73 = vmatprep.subr.mxu0 0.0
    %74 = vmatpush1.msra.mxu0 0.0
    %75 = vmatprep.subr.mxu0 0.0
    %76 = vmatpush1.msra.mxu0 0.0
    %77 = vmatprep.subr.mxu0 0.0
    %78 = vmatpush1.msra.mxu0 0.0
    %79 = vmatprep.subr.mxu0 0.0
    %80 = vmatpush1.msra.mxu0 0.0
    %81 = vmatprep.subr.mxu0 0.0
    %82 = vmatpush1.msra.mxu0 0.0
    %83 = vmatprep.subr.mxu0 0.0
    %84 = vmatpush1.msra.mxu0 0.0
    %85 = vmatprep.subr.mxu0 0.0
    %86 = vmatpush1.msra.mxu0 0.0
    %87 = vmatprep.subr.mxu0 0.0
    %88 = vmatpush1.msra.mxu0 %v48
    %89 = vmatprep.subr.mxu0 0.0
    %90 = vmatpush1.msra.mxu0 %v47
    %91 = vmatprep.subr.mxu0 0.0
    %92 = vmatpush1.msra.mxu0 %v46
    %93 = vmatprep.subr.mxu0 0.0
    %94 = vmatpush1.msra.mxu0 %v45
    %95 = vmatprep.subr.mxu0 0.0
    %96 = vmatpush2.msra.mxu0 0.0
    %97 = vmatprep.subr.mxu0 0.0
    %98 = vmatpush2.msra.mxu0 0.0
    %99 = vmatprep.subr.mxu0 0.0
    %100 = vmatpush2.msra.mxu0 0.0
    %101 = vmatprep.subr.mxu0 0.0
    %102 = vmatpush2.msra.mxu0 0.0
    %103 = vmatprep.subr.mxu0 0.0
    %104 = vmatpush2.msra.mxu0 0.0
    %105 = vmatprep.subr.mxu0 0.0
    %106 = vmatpush2.msra.mxu0 0.0
    %107 = vmatprep.subr.mxu0 0.0
    %108 = vmatpush2.msra.mxu0 0.0
    %109 = vmatprep.subr.mxu0 0.0
    %110 = vmatpush2.msra.mxu0 0.0
    %111 = vmatprep.subr.mxu0 0.0
    %112 = vmatpush2.msra.mxu0 0.0
    %113 = vmatprep.subr.mxu0 0.0
    %114 = vmatpush2.msra.mxu0 0.0
    %115 = vmatprep.subr.mxu0 0.0
    %116 = vmatpush2.msra.mxu0 0.0
    %117 = vmatprep.subr.mxu0 0.0
    %118 = vmatpush2.msra.mxu0 0.0
    %119 = vmatprep.subr.mxu0 0.0
    %120 = vmatpush2.msra.mxu0 0.0
    %121 = vmatprep.subr.mxu0 0.0
    %122 = vmatpush2.msra.mxu0 0.0
    %123 = vmatprep.subr.mxu0 0.0
    %124 = vmatpush2.msra.mxu0 0.0
    %125 = vmatprep.subr.mxu0 0.0
    %126 = vmatpush2.msra.mxu0 0.0
    %127 = vmatprep.mubr.f32.mxu0 0.0
    %128 = vmatmul.mubr.f32.gmra.mxu0 %v58
    %v129 = vpop.f32.mrf.mxu0
    %v130 = vadd.f32 %v54, %v129
    %v131 = vpop.f32.mrf.mxu0
    %132 = vmatprep.mubr.f32.mxu0 0.0
    %133 = vmatmul.mubr.f32.gmra.mxu0 %v61
    %v134 = vpop.f32.mrf.mxu0
    %v135 = vadd.f32 %v54, %v134
    %v136 = vpop.f32.mrf.mxu0
    %137 = vdwg.mxu0
    %v138 = vmax.f32 %v130, 0.0
    %v139 = vmax.f32 %v135, 0.0
    %140 = vst [vmem:[#allocation7] sm:$0xff] %v138
    %141 = vst [vmem:[#allocation7 + $0x8] sm:$0xff] %v139
    // Predicated region
    $region22: #{tpu_custom_call.1} parent=1 // pred_check
      _
    $region23: #{tpu_custom_call.1} parent=1 // pred_check_branch
      %143 = sbr.rel (0) target = $region25
    $region24: #{tpu_custom_call.1} parent=1 // pred_region
      %s145 = ssub.s32 256, 256
      %146 = vsyncadd [#allocation4], %s145
      %s147 = sshll.u32 [#allocation7], 4
      %s148 = int_to_ptr.vmem [resolvable:$true] %s147
      %153 = dma.vmem_to_hbm [thread:$0]  %s148, 256, %s3, [#allocation4], 128, 128, 8
    $region25: #{tpu_custom_call.1} parent=1 // pred_fallthru
      _
    // Predicated region
    $region26: #{tpu_custom_call.1} parent=1 // pred_check
      _
    $region27: #{tpu_custom_call.1} parent=1 // pred_check_branch
      %155 = sbr.rel (0) target = $region29
    $region28: #{tpu_custom_call.1} parent=1 // pred_region
      %156 = dma.done [#allocation4], 256
    $region29: #{tpu_custom_call.1} parent=1 // pred_fallthru
      _
    %157 = vsyncpa [#allocation3], 1
    %158 = vsyncpa [#allocation6], 1
    %159 = vsyncpa [#allocation4], 1

</llo_original>
